<compile_context>
chip_gen: v7x
topology: tpu7x:2x2x1
jax: 0.10.0
libtpu: 0.0.40
codegen_flags: <defaults>
</compile_context>

<pallas_src>
from functools import partial
from typing import Dict, List, Union

import jax
import jax.numpy as jnp
from jax.experimental import pallas as pl
from jax.experimental.pallas import tpu as pltpu

HOP = 320        # codec downsample rate (get_downsample_rates -> 320)
DIM = 64         # codec embedding dimension (synthetic)
DIM_PAD = 128    # lane-padded embedding dimension
K = 64           # codebook size per quantizer (synthetic)
K_PAD = 128      # lane-padded codebook size (padded rows masked via 1e30 c_sq)
NQ = 8           # number of RVQ codebooks active at target_bw=4
TN_MAX = 1024    # frame-tile rows (multiple of 16 for bf16 frames)


def _round_up(x, m):
    return ((x + m - 1) // m) * m


def _xcodec_kernel(frames_ref, w_ref, b_ref, cbm2t_ref, cb_ref, csq_ref, embed_ref):
    # ---- encoder: strided conv (kernel = stride = HOP) == per-frame projection ----
    # bf16 frames x bf16 weights, f32 accumulation on the MXU.
    z = jnp.dot(frames_ref[...], w_ref[...],
                preferred_element_type=jnp.float32) + b_ref[...]        # (TN, D_PAD)

    n_q = cb_ref.shape[0]

    # ---- codec.encode (RVQ nearest-neighbour) + codec.get_embed (sum of codes) ----
    def rvq_step(q, r):
        # cross2 = -2 * r . c_k  (the -2 is folded into the resident bf16 codebook,
        # which is stored pre-transposed as (D_PAD, K_PAD)); f32 accumulation.
        cross2 = jnp.dot(r.astype(jnp.bfloat16), cbm2t_ref[q],
                         preferred_element_type=jnp.float32)            # (TN, K_PAD)
        # argmin_k ||r - c_k||^2 == argmin_k (||c_k||^2 - 2 r.c_k); ||r||^2 dropped.
        dist = csq_ref[q] + cross2                                      # (TN, K_PAD)
        dmin = jnp.min(dist, axis=-1, keepdims=True)   # single XLU lane reduction
        # NOTE: exact ties select every tied codeword (torch.argmin picks the first);
        # probability ~0 for random float codebooks.
        onehot = (dist == dmin).astype(jnp.float32)
        # gather via MXU; kept f32 so the residual update is exact given selection.
        e = jnp.dot(onehot, cb_ref[q], preferred_element_type=jnp.float32)
        return r - e

    r = jax.lax.fori_loop(0, n_q, rvq_step, z)

    # sum of selected codebook vectors == z - final residual
    embed_ref[...] = z - r


def xcodec_encode_embed(frames_bf16, w_enc, b_enc, cb_m2t, cb_f32, c_sq, *,
                        tn_max=TN_MAX):
    """frames: (N, HOP) bf16 -> padded embedding slab (N_pad, DIM_PAD) f32."""
    n, f = frames_bf16.shape
    dp = w_enc.shape[1]
    nq, kp, _ = cb_f32.shape

    # Pick a tile that is a multiple of 16 (bf16 sublane packing) and gives the
    # 1-D parallel grid >= 2 tiles whenever the input allows (v7x: 2 TensorCores).
    tn = min(tn_max, max(16, _round_up(pl.cdiv(n, 2), 16)))
    n_pad = pl.cdiv(n, tn) * tn
    if n_pad != n:
        frames_bf16 = jnp.pad(frames_bf16, ((0, n_pad - n), (0, 0)))

    flops = 2 * n_pad * (f * dp + nq * 2 * kp * dp)
    bytes_accessed = (
        n_pad * f * 2                       # bf16 frame stream in
        + n_pad * dp * 4                    # f32 embedding slab out
        + f * dp * 2 + dp * 4               # encoder weight (bf16) + bias (f32)
        + nq * kp * dp * (2 + 4)            # codebooks: bf16 (-2, transposed) + f32
        + nq * kp * 4                       # codebook norms
    )

    embed = pl.pallas_call(
        _xcodec_kernel,
        grid=(n_pad // tn,),
        in_specs=[
            pl.BlockSpec((tn, f), lambda i: (i, 0)),           # frames: tiled over N
            pl.BlockSpec((f, dp), lambda i: (0, 0)),           # encoder weight: resident
            pl.BlockSpec((1, dp), lambda i: (0, 0)),           # encoder bias: resident
            pl.BlockSpec((nq, dp, kp), lambda i: (0, 0, 0)),   # -2*cb^T bf16: resident
            pl.BlockSpec((nq, kp, dp), lambda i: (0, 0, 0)),   # cb f32: resident
            pl.BlockSpec((nq, 1, kp), lambda i: (0, 0, 0)),    # ||cb||^2: resident
        ],
        out_specs=pl.BlockSpec((tn, dp), lambda i: (i, 0)),
        out_shape=jax.ShapeDtypeStruct((n_pad, dp), jnp.float32),
        compiler_params=pltpu.CompilerParams(
            dimension_semantics=("parallel",),
            vmem_limit_bytes=32 * 1024 * 1024),
        cost_estimate=pl.CostEstimate(
            flops=flops, transcendentals=0, bytes_accessed=bytes_accessed),
    )(frames_bf16, w_enc, b_enc, cb_m2t, cb_f32, c_sq)
    return embed


@partial(jax.jit, static_argnames=("b", "n_frames"))
def _forward_embed(frames_bf16, w_enc, b_enc, cb_m2t, cb_f32, c_sq, *, b, n_frames):
    slab = xcodec_encode_embed(frames_bf16, w_enc, b_enc, cb_m2t, cb_f32, c_sq)
    # Single fused crop: drop tile-padding rows and the 64 zero-padded lanes,
    # then reshape to (B, T//320, D) == get_embed(codes).transpose(1, 2).
    return slab[: b * n_frames, :DIM].reshape(b, n_frames, DIM)


class XCodecUpstreamExpert:
    """Synthetic-weight JAX/Pallas reimplementation of the s3prl XCodec expert."""

    def __init__(self, key=jax.random.PRNGKey(42)):
        self.name = "[XCodec UpstreamExpert]"
        k1, k2, k3 = jax.random.split(key, 3)
        # Deterministic synthetic parameters (no checkpoint loading).
        w = (jax.random.normal(k1, (HOP, DIM), jnp.float32)
             * (1.0 / jnp.sqrt(jnp.float32(HOP))))
        b = jax.random.normal(k2, (1, DIM), jnp.float32) * 0.01
        cb = jax.random.normal(k3, (NQ, K, DIM), jnp.float32)

        # Lane-pad D (and K) to 128 with zeros -- exact for all dot products.
        w_pad = jnp.pad(w, ((0, 0), (0, DIM_PAD - DIM)))
        self.w_enc = w_pad.astype(jnp.bfloat16)
        self.b_enc = jnp.pad(b, ((0, 0), (0, DIM_PAD - DIM)))
        cb_pad = jnp.pad(cb, ((0, 0), (0, K_PAD - K), (0, DIM_PAD - DIM)))
        self.codebooks = cb_pad                                   # f32 (NQ,K_PAD,D_PAD)

        # Resident bf16 codebook with the -2 distance scale folded in, pre-transposed
        # to (NQ, D_PAD, K_PAD) so the distance cross-term is a plain matmul.
        self.cb_m2t = jnp.transpose(-2.0 * cb_pad, (0, 2, 1)).astype(jnp.bfloat16)

        # Codebook norms computed from the bf16-rounded codebook (self-consistent with
        # the bf16 cross term); padded rows get a huge sentinel so the nearest-neighbour
        # search can never select an all-zero padded code.
        cbq = cb_pad.astype(jnp.bfloat16).astype(jnp.float32)
        c_sq = jnp.sum(cbq * cbq, axis=-1)                        # (NQ, K_PAD)
        pad_mask = (jnp.arange(K_PAD) >= K)[None, :]
        c_sq = jnp.where(pad_mask, jnp.float32(1e30), c_sq)
        self.c_sq = c_sq[:, None, :]                              # (NQ, 1, K_PAD)

    def get_downsample_rates(self, key: str) -> int:
        return 320

    def forward(self, wavs: List[jnp.ndarray]) -> Dict[str, Union[jnp.ndarray, List[jnp.ndarray]]]:
        # pad_sequence(batch_first=True).unsqueeze(-1).transpose(1, 2) -> (B, 1, T)
        max_len = max(int(w.shape[0]) for w in wavs)
        padded_len = ((max_len + HOP - 1) // HOP) * HOP
        # TODO(synk): the real codec's conv stack handles non-multiple-of-320 lengths
        # via internal padding; here we zero-pad up to a multiple of the hop size.
        batch = jnp.stack(
            [jnp.pad(w.astype(jnp.float32), (0, padded_len - w.shape[0])) for w in wavs]
        )  # (B, T)
        b, t = batch.shape
        n_frames = t // HOP
        # bf16 frames: halves the dominant HBM stream (matmul consumed bf16 anyway).
        frames = batch.reshape(b * n_frames, HOP).astype(jnp.bfloat16)

        embed = _forward_embed(frames, self.w_enc, self.b_enc, self.cb_m2t,
                               self.codebooks, self.c_sq, b=b, n_frames=n_frames)

        hs = [embed]
        return {
            "hidden_states": hs, "PR": hs, "ASR": hs, "QbE": hs, "SID": hs, "ASV": hs,
            "SD": hs, "ER": hs, "SF": hs, "SE": hs, "SS": hs, "secret": hs,
        }


if __name__ == "__main__":
    key = jax.random.PRNGKey(0)
    k1, k2 = jax.random.split(key)
    # Small variable-length "waveforms": batch of 2, lengths 2560 and 1920 samples.
    wav0 = jax.random.normal(k1, (2560,), jnp.float32)
    wav1 = jax.random.normal(k2, (1920,), jnp.float32)

    expert = XCodecUpstreamExpert()
    out = expert.forward([wav0, wav1])
    embed = out["hidden_states"][0]
    jax.block_until_ready(embed)

    assert embed.shape == (2, 2560 // HOP, DIM), embed.shape
    assert embed.dtype == jnp.float32
    assert bool(jnp.all(jnp.isfinite(embed)))
    print("KERNEL_OK")
</pallas_src>

<mosaic_0001>
module attributes {stable_mosaic.version = 11 : i64} {
  func.func @_xcodec_kernel(%arg0: i32, %arg1: memref<16x320xbf16, #tpu.memory_space<vmem>>, %arg2: memref<320x128xbf16, #tpu.memory_space<vmem>>, %arg3: memref<1x128xf32, #tpu.memory_space<vmem>>, %arg4: memref<8x128x128xbf16, #tpu.memory_space<vmem>>, %arg5: memref<8x128x128xf32, #tpu.memory_space<vmem>>, %arg6: memref<8x1x128xf32, #tpu.memory_space<vmem>>, %arg7: memref<16x128xf32, #tpu.memory_space<vmem>>) attributes {dimension_semantics = [#tpu.dimension_semantics<parallel>], iteration_bounds = array<i64: 1>, scalar_prefetch = 0 : i64, scratch_operands = 0 : i64, tpu.core_type = #tpu.core_type<tc>, window_params = [{transform_indices = @transform_0, window_bounds = array<i64: 16, 320>}, {pipeline_mode = #tpu.pipeline_mode<synchronous>, transform_indices = @transform_1, window_bounds = array<i64: 320, 128>}, {pipeline_mode = #tpu.pipeline_mode<synchronous>, transform_indices = @transform_2, window_bounds = array<i64: 1, 128>}, {pipeline_mode = #tpu.pipeline_mode<synchronous>, transform_indices = @transform_3, window_bounds = array<i64: 8, 128, 128>}, {pipeline_mode = #tpu.pipeline_mode<synchronous>, transform_indices = @transform_4, window_bounds = array<i64: 8, 128, 128>}, {pipeline_mode = #tpu.pipeline_mode<synchronous>, transform_indices = @transform_5, window_bounds = array<i64: 8, 1, 128>}, {transform_indices = @transform_6, window_bounds = array<i64: 16, 128>}]} {
    %c0 = arith.constant 0 : index
    %c0_0 = arith.constant 0 : index
    %0 = vector.load %arg1[%c0, %c0_0] : memref<16x320xbf16, #tpu.memory_space<vmem>>, vector<16x320xbf16>
    %c0_1 = arith.constant 0 : index
    %c0_2 = arith.constant 0 : index
    %1 = vector.load %arg2[%c0_1, %c0_2] : memref<320x128xbf16, #tpu.memory_space<vmem>>, vector<320x128xbf16>
    %cst = arith.constant dense<0.000000e+00> : vector<16x128xf32>
    %2 = tpu.matmul %0, %1, %cst {dimension_numbers = #tpu.dot_dimension_numbers<[1], [0], [0], [1], [0, 0, 1, 1], [], []>} : vector<16x320xbf16>, vector<320x128xbf16>, vector<16x128xf32> -> vector<16x128xf32>
    %c0_3 = arith.constant 0 : index
    %c0_4 = arith.constant 0 : index
    %3 = vector.load %arg3[%c0_3, %c0_4] : memref<1x128xf32, #tpu.memory_space<vmem>>, vector<1x128xf32>
    %4 = vector.broadcast %3 : vector<1x128xf32> to vector<16x128xf32>
    %5 = arith.addf %2, %4 : vector<16x128xf32>
    %c0_i32 = arith.constant 0 : i32
    %c8_i32 = arith.constant 8 : i32
    %6 = arith.addi %c0_i32, %c8_i32 : i32
    %c1_i32 = arith.constant 1 : i32
    %7 = scf.for %arg8 = %c0_i32 to %6 step %c1_i32 iter_args(%arg9 = %5) -> (vector<16x128xf32>)  : i32 {
      %10 = arith.truncf %arg9 : vector<16x128xf32> to vector<16x128xbf16>
      %11 = arith.index_cast %arg8 : i32 to index
      %c0_8 = arith.constant 0 : index
      %c0_9 = arith.constant 0 : index
      %12 = vector.load %arg4[%11, %c0_8, %c0_9] : memref<8x128x128xbf16, #tpu.memory_space<vmem>>, vector<1x128x128xbf16>
      %13 = vector.shape_cast %12 : vector<1x128x128xbf16> to vector<128x128xbf16>
      %cst_10 = arith.constant dense<0.000000e+00> : vector<16x128xf32>
      %14 = tpu.matmul %10, %13, %cst_10 {dimension_numbers = #tpu.dot_dimension_numbers<[1], [0], [0], [1], [0, 0, 1, 1], [], []>} : vector<16x128xbf16>, vector<128x128xbf16>, vector<16x128xf32> -> vector<16x128xf32>
      %15 = arith.index_cast %arg8 : i32 to index
      %c0_11 = arith.constant 0 : index
      %c0_12 = arith.constant 0 : index
      %16 = vector.load %arg6[%15, %c0_11, %c0_12] : memref<8x1x128xf32, #tpu.memory_space<vmem>>, vector<1x1x128xf32>
      %17 = vector.shape_cast %16 : vector<1x1x128xf32> to vector<1x128xf32>
      %18 = vector.broadcast %17 : vector<1x128xf32> to vector<16x128xf32>
      %19 = arith.addf %18, %14 : vector<16x128xf32>
      %cst_13 = arith.constant dense<0x7F800000> : vector<16xf32>
      %20 = vector.multi_reduction <minimumf>, %19, %cst_13 [1] : vector<16x128xf32> to vector<16xf32>
      %21 = vector.shape_cast %20 : vector<16xf32> to vector<16x1xf32>
      %22 = vector.broadcast %21 : vector<16x1xf32> to vector<16x128xf32>
      %23 = arith.cmpf oeq, %19, %22 : vector<16x128xf32>
      %24 = arith.extui %23 : vector<16x128xi1> to vector<16x128xi32>
      %25 = arith.sitofp %24 : vector<16x128xi32> to vector<16x128xf32>
      %26 = arith.index_cast %arg8 : i32 to index
      %c0_14 = arith.constant 0 : index
      %c0_15 = arith.constant 0 : index
      %27 = vector.load %arg5[%26, %c0_14, %c0_15] : memref<8x128x128xf32, #tpu.memory_space<vmem>>, vector<1x128x128xf32>
      %28 = vector.shape_cast %27 : vector<1x128x128xf32> to vector<128x128xf32>
      %cst_16 = arith.constant dense<0.000000e+00> : vector<16x128xf32>
      %29 = tpu.matmul %25, %28, %cst_16 {dimension_numbers = #tpu.dot_dimension_numbers<[1], [0], [0], [1], [0, 0, 1, 1], [], []>} : vector<16x128xf32>, vector<128x128xf32>, vector<16x128xf32> -> vector<16x128xf32>
      %30 = arith.subf %arg9, %29 : vector<16x128xf32>
      scf.yield %30 : vector<16x128xf32>
    }
    %c8_i32_5 = arith.constant 8 : i32
    %8 = arith.subf %5, %7 : vector<16x128xf32>
    %c0_6 = arith.constant 0 : index
    %c0_7 = arith.constant 0 : index
    %9 = vector.load %arg7[%c0_6, %c0_7] : memref<16x128xf32, #tpu.memory_space<vmem>>, vector<16x128xf32>
    tpu.vector_store %arg7[%c0_6, %c0_7], %8 {strides = array<i32>} : memref<16x128xf32, #tpu.memory_space<vmem>>, vector<16x128xf32>,
    return
  }
  func.func @transform_0(%arg0: i32) -> (i32, i32) {
    %c0_i32 = arith.constant 0 : i32
    %c0_i32_0 = arith.constant 0 : i32
    return %arg0, %c0_i32 : i32, i32
  }
  func.func @transform_1(%arg0: i32) -> (i32, i32) {
    %c0_i32 = arith.constant 0 : i32
    %c0_i32_0 = arith.constant 0 : i32
    %c0_i32_1 = arith.constant 0 : i32
    return %c0_i32, %c0_i32_0 : i32, i32
  }
  func.func @transform_2(%arg0: i32) -> (i32, i32) {
    %c0_i32 = arith.constant 0 : i32
    %c0_i32_0 = arith.constant 0 : i32
    %c0_i32_1 = arith.constant 0 : i32
    return %c0_i32, %c0_i32_0 : i32, i32
  }
  func.func @transform_3(%arg0: i32) -> (i32, i32, i32) {
    %c0_i32 = arith.constant 0 : i32
    %c0_i32_0 = arith.constant 0 : i32
    %c0_i32_1 = arith.constant 0 : i32
    %c0_i32_2 = arith.constant 0 : i32
    return %c0_i32, %c0_i32_0, %c0_i32_1 : i32, i32, i32
  }
  func.func @transform_4(%arg0: i32) -> (i32, i32, i32) {
    %c0_i32 = arith.constant 0 : i32
    %c0_i32_0 = arith.constant 0 : i32
    %c0_i32_1 = arith.constant 0 : i32
    %c0_i32_2 = arith.constant 0 : i32
    return %c0_i32, %c0_i32_0, %c0_i32_1 : i32, i32, i32
  }
  func.func @transform_5(%arg0: i32) -> (i32, i32, i32) {
    %c0_i32 = arith.constant 0 : i32
    %c0_i32_0 = arith.constant 0 : i32
    %c0_i32_1 = arith.constant 0 : i32
    %c0_i32_2 = arith.constant 0 : i32
    return %c0_i32, %c0_i32_0, %c0_i32_1 : i32, i32, i32
  }
  func.func @transform_6(%arg0: i32) -> (i32, i32) {
    %c0_i32 = arith.constant 0 : i32
    %c0_i32_0 = arith.constant 0 : i32
    return %arg0, %c0_i32 : i32, i32
  }
}

</mosaic_0001>

<llo_original>
// kernel: _forward_embed.1
$region0: #{_forward_embed.1}
  #allocation0 [shape = 'u32[]', space=smem, size = 0x4, offset = 0x4, fixed_abs, tag = 'smem constant byte address 0x4 - core index']
  #allocation1 [shape = 'u32[144,128]{1,0:T(1,128)}', space=vmem, size = 0x12000, scoped, tag = 'internal scratch']
  %s0 = inlined_call_operand.hbm [shape: bf16[16,320], index: 0, kind: input, shape index: {}]
  %s1 = inlined_call_operand.hbm [shape: bf16[320,128], index: 1, kind: input, shape index: {}]
  %s2 = inlined_call_operand.vmem [shape: f32[1,128], index: 2, kind: input, shape index: {}]
  %s3 = inlined_call_operand.hbm [shape: bf16[8,128,128], index: 3, kind: input, shape index: {}]
  %s4 = inlined_call_operand.hbm [shape: f32[8,128,128], index: 4, kind: input, shape index: {}]
  %s5 = inlined_call_operand.vmem [shape: f32[8,1,128], index: 5, kind: input, shape index: {}]
  %s6 = inlined_call_operand.vmem [shape: f32[16,128], index: 6, kind: output, shape index: {}]
  %s7 = sld [smem:[#allocation0]]
  $region57: #{_forward_embed.1} parent=0
    _
  %s9 = ssub.s32 1, %s7
  %s10 = scalar_select 0, %s9, %s7
  $region1: #{_forward_embed.1} parent=0
    #allocation2 [shape = 'u8[12288]{0}', space=vmem, size = 0x3000, scoped, tag = 'input window, operand 0, single buffered']
    #allocation3 [shape = 's32[1]{0}', space=sflag, size = 0x4, scoped, tag = 'scoped memory for _forward_embed.1']
    #allocation4 [shape = 'u8[81920]{0}', space=vmem, size = 0x14000, scoped, tag = 'input window, operand 1, single buffered']
    #allocation5 [shape = 's32[1]{0}', space=sflag, size = 0x4, scoped, tag = 'scoped memory for _forward_embed.1']
    #allocation6 [shape = 'u8[262144]{0}', space=vmem, size = 0x40000, scoped, tag = 'input window, operand 3, single buffered']
    #allocation7 [shape = 'u8[524288]{0}', space=vmem, size = 0x80000, scoped, tag = 'input window, operand 4, single buffered']
    #allocation8 [shape = 's32[1]{0}', space=sflag, size = 0x4, scoped, tag = 'scoped memory for _forward_embed.1']
    %11 = vsyncpa [#allocation3], 0
    %12 = vsyncpa [#allocation5], 0
    %13 = vsyncpa [#allocation8], 0
    // Predicated region
    $region2: #{_forward_embed.1} parent=1 // pred_check
      _
    $region3: #{_forward_embed.1} parent=1 // pred_check_branch
      %15 = sbr.rel (0) target = $region5
    $region4: #{_forward_embed.1} parent=1 // pred_region
      %s17 = ssub.s32 384, 384
      %18 = vsyncadd [#allocation3], %s17
      %s19 = sshll.u32 [#allocation2], 4
      %s20 = int_to_ptr.vmem [resolvable:$true] %s19
      %25 = dma.hbm_to_vmem [thread:$0]  %s0, 384, %s20, [#allocation3], 192, 192, 12
    $region5: #{_forward_embed.1} parent=1 // pred_fallthru
      _
    // Predicated region
    $region6: #{_forward_embed.1} parent=1 // pred_check
      _
    $region7: #{_forward_embed.1} parent=1 // pred_check_branch
      %27 = sbr.rel (0) target = $region9
    $region8: #{_forward_embed.1} parent=1 // pred_region
      %s29 = ssub.s32 2560, 2560
      %30 = vsyncadd [#allocation5], %s29
      %s31 = sshll.u32 [#allocation4], 4
      %s32 = int_to_ptr.vmem [resolvable:$true] %s31
      %37 = dma.hbm_to_vmem [thread:$0]  %s1, 2560, %s32, [#allocation5], 64, 64, 4
    $region9: #{_forward_embed.1} parent=1 // pred_fallthru
      _
    // Predicated region
    $region10: #{_forward_embed.1} parent=1 // pred_check
      _
    $region11: #{_forward_embed.1} parent=1 // pred_check_branch
      %39 = sbr.rel (0) target = $region13
    $region12: #{_forward_embed.1} parent=1 // pred_region
      _
    $region13: #{_forward_embed.1} parent=1 // pred_fallthru
      _
    // Predicated region
    $region14: #{_forward_embed.1} parent=1 // pred_check
      _
    $region15: #{_forward_embed.1} parent=1 // pred_check_branch
      %41 = sbr.rel (0) target = $region17
    $region16: #{_forward_embed.1} parent=1 // pred_region
      %s43 = ssub.s32 8192, 8192
      %44 = vsyncadd [#allocation5], %s43
      %s45 = sshll.u32 [#allocation6], 4
      %s46 = int_to_ptr.vmem [resolvable:$true] %s45
      %51 = dma.hbm_to_vmem [thread:$0]  %s3, 8192, %s46, [#allocation5], 64, 64, 4
    $region17: #{_forward_embed.1} parent=1 // pred_fallthru
      _
    // Predicated region
    $region18: #{_forward_embed.1} parent=1 // pred_check
      _
    $region19: #{_forward_embed.1} parent=1 // pred_check_branch
      %53 = sbr.rel (0) target = $region21
    $region20: #{_forward_embed.1} parent=1 // pred_region
      %s55 = ssub.s32 16384, 16384
      %56 = vsyncadd [#allocation8], %s55
      %s57 = sshll.u32 [#allocation7], 4
      %s58 = int_to_ptr.vmem [resolvable:$true] %s57
      %63 = dma.hbm_to_vmem [thread:$0]  %s4, 16384, %s58, [#allocation8], 128, 128, 8
    $region21: #{_forward_embed.1} parent=1 // pred_fallthru
      _
    // Predicated region
    $region22: #{_forward_embed.1} parent=1 // pred_check
      _
    $region23: #{_forward_embed.1} parent=1 // pred_check_branch
      %65 = sbr.rel (0) target = $region25
    $region24: #{_forward_embed.1} parent=1 // pred_region
      _
    $region25: #{_forward_embed.1} parent=1 // pred_fallthru
      _
    // Predicated region
    $region26: #{_forward_embed.1} parent=1 // pred_check
      _
    $region27: #{_forward_embed.1} parent=1 // pred_check_branch
      %67 = sbr.rel (0) target = $region29
    $region28: #{_forward_embed.1} parent=1 // pred_region
      %68 = dma.done [#allocation3], 384
    $region29: #{_forward_embed.1} parent=1 // pred_fallthru
      _
    // Predicated region
    $region30: #{_forward_embed.1} parent=1 // pred_check
      _
    $region31: #{_forward_embed.1} parent=1 // pred_check_branch
      %70 = sbr.rel (0) target = $region33
    $region32: #{_forward_embed.1} parent=1 // pred_region
      %71 = dma.done [#allocation5], 2560
    $region33: #{_forward_embed.1} parent=1 // pred_fallthru
      _
    // Predicated region
    $region34: #{_forward_embed.1} parent=1 // pred_check
      _
    $region35: #{_forward_embed.1} parent=1 // pred_check_branch
      %73 = sbr.rel (0) target = $region37
    $region36: #{_forward_embed.1} parent=1 // pred_region
      %74 = dma.done [#allocation5], 8192
    $region37: #{_forward_embed.1} parent=1 // pred_fallthru
      _
    // Predicated region
    $region38: #{_forward_embed.1} parent=1 // pred_check
      _
    $region39: #{_forward_embed.1} parent=1 // pred_check_branch
      %76 = sbr.rel (0) target = $region41
    $region40: #{_forward_embed.1} parent=1 // pred_region
      %77 = dma.done [#allocation8], 16384
    $region41: #{_forward_embed.1} parent=1 // pred_fallthru
      _
    %v79 = vld [vmem:[#allocation2] sm:$0xff]
    %v80 = vld [vmem:[#allocation2 + $0x8] sm:$0xf]
    %v81 = vld [vmem:[#allocation2 + $0xc] sm:$0xff]
    %v82 = vld [vmem:[#allocation2 + $0x14] sm:$0xf]
    %v83 = vld [vmem:[#allocation4] sm:$0xf]
    %v84 = vld [vmem:[#allocation4 + $0x4] sm:$0xf]
    %v85 = vld [vmem:[#allocation4 + $0x8] sm:$0xf]
    %v86 = vld [vmem:[#allocation4 + $0xc] sm:$0xf]
    %v87 = vld [vmem:[#allocation4 + $0x10] sm:$0xf]
    %v88 = vld [vmem:[#allocation4 + $0x14] sm:$0xf]
    %v89 = vld [vmem:[#allocation4 + $0x18] sm:$0xf]
    %v90 = vld [vmem:[#allocation4 + $0x1c] sm:$0xf]
    %v91 = vld [vmem:[#allocation4 + $0x20] sm:$0xf]
    %v92 = vld [vmem:[#allocation4 + $0x24] sm:$0xf]
    %v93 = vld [vmem:[#allocation4 + $0x28] sm:$0xf]
    %v94 = vld [vmem:[#allocation4 + $0x2c] sm:$0xf]
    %v95 = vld [vmem:[#allocation4 + $0x30] sm:$0xf]
    %v96 = vld [vmem:[#allocation4 + $0x34] sm:$0xf]
    %v97 = vld [vmem:[#allocation4 + $0x38] sm:$0xf]
    %v98 = vld [vmem:[#allocation4 + $0x3c] sm:$0xf]
    %v99 = vld [vmem:[#allocation4 + $0x40] sm:$0xf]
    %v100 = vld [vmem:[#allocation4 + $0x44] sm:$0xf]
    %v101 = vld [vmem:[#allocation4 + $0x48] sm:$0xf]
    %v102 = vld [vmem:[#allocation4 + $0x4c] sm:$0xf]
    %v103 = vld [vmem:[#allocation4 + $0x50] sm:$0xf]
    %v104 = vld [vmem:[#allocation4 + $0x54] sm:$0xf]
    %v105 = vld [vmem:[#allocation4 + $0x58] sm:$0xf]
    %v106 = vld [vmem:[#allocation4 + $0x5c] sm:$0xf]
    %v107 = vld [vmem:[#allocation4 + $0x60] sm:$0xf]
    %v108 = vld [vmem:[#allocation4 + $0x64] sm:$0xf]
    %v109 = vld [vmem:[#allocation4 + $0x68] sm:$0xf]
    %v110 = vld [vmem:[#allocation4 + $0x6c] sm:$0xf]
    %v111 = vld [vmem:[#allocation4 + $0x70] sm:$0xf]
    %v112 = vld [vmem:[#allocation4 + $0x74] sm:$0xf]
    %v113 = vld [vmem:[#allocation4 + $0x78] sm:$0xf]
    %v114 = vld [vmem:[#allocation4 + $0x7c] sm:$0xf]
    %v115 = vld [vmem:[#allocation4 + $0x80] sm:$0xf]
    %v116 = vld [vmem:[#allocation4 + $0x84] sm:$0xf]
    %v117 = vld [vmem:[#allocation4 + $0x88] sm:$0xf]
    %v118 = vld [vmem:[#allocation4 + $0x8c] sm:$0xf]
    %v119 = vld [vmem:[#allocation4 + $0x90] sm:$0xf]
    %v120 = vld [vmem:[#allocation4 + $0x94] sm:$0xf]
    %v121 = vld [vmem:[#allocation4 + $0x98] sm:$0xf]
    %v122 = vld [vmem:[#allocation4 + $0x9c] sm:$0xf]
    %v123 = vld [vmem:[%s2] sm:$0x1]
    %v125 = vlaneseq
    %v126 = vshrl.u32 %v125, 7
    %v127 = vsub.s32 0, %v126
    %v128 = vrot.slane %v123, %v127
    %v134 = vunpack.c.l.b16 %v79
    %v135 = vunpack.c.h.b16 %v79
    %v136 = vunpack.c.l.b16 %v80
    %v137 = vunpack.c.l.b16 %v81
    %v138 = vunpack.c.h.b16 %v81
    %v139 = vunpack.c.l.b16 %v82
    %v140 = vpack.c.b16 %v137, %v134
    %v141 = vpack.c.b16 %v138, %v135
    %v142 = vpack.c.b16 %v139, %v136
    %v185 = vunpack.c.l.b16 %v83
    %v186 = vunpack.c.l.b16 %v84
    %v187 = vunpack.c.l.b16 %v85
    %v188 = vunpack.c.l.b16 %v86
    %v189 = vunpack.c.l.b16 %v87
    %v190 = vunpack.c.l.b16 %v88
    %v191 = vunpack.c.l.b16 %v89
    %v192 = vunpack.c.l.b16 %v90
    %v193 = vunpack.c.l.b16 %v91
    %v194 = vunpack.c.l.b16 %v92
    %v195 = vunpack.c.l.b16 %v93
    %v196 = vunpack.c.l.b16 %v94
    %v197 = vunpack.c.l.b16 %v95
    %v198 = vunpack.c.l.b16 %v96
    %v199 = vunpack.c.l.b16 %v97
    %v200 = vunpack.c.l.b16 %v98
    %v201 = vunpack.c.l.b16 %v99
    %v202 = vunpack.c.l.b16 %v100
    %v203 = vunpack.c.l.b16 %v101
    %v204 = vunpack.c.l.b16 %v102
    %v205 = vunpack.c.l.b16 %v103
    %v206 = vunpack.c.l.b16 %v104
    %v207 = vunpack.c.l.b16 %v105
    %v208 = vunpack.c.l.b16 %v106
    %v209 = vunpack.c.l.b16 %v107
    %v210 = vunpack.c.l.b16 %v108
    %v211 = vunpack.c.l.b16 %v109
    %v212 = vunpack.c.l.b16 %v110
    %v213 = vunpack.c.l.b16 %v111
    %v214 = vunpack.c.l.b16 %v112
    %v215 = vunpack.c.l.b16 %v113
    %v216 = vunpack.c.l.b16 %v114
    %v217 = vunpack.c.l.b16 %v115
    %v218 = vunpack.c.l.b16 %v116
    %v219 = vunpack.c.l.b16 %v117
    %v220 = vunpack.c.l.b16 %v118
    %v221 = vunpack.c.l.b16 %v119
    %v222 = vunpack.c.l.b16 %v120
    %v223 = vunpack.c.l.b16 %v121
    %v224 = vunpack.c.l.b16 %v122
    %v225 = vpack.c.b16 %v186, %v185
    %v226 = vpack.c.b16 %v188, %v187
    %v227 = vpack.c.b16 %v190, %v189
    %v228 = vpack.c.b16 %v192, %v191
    %v229 = vpack.c.b16 %v194, %v193
    %v230 = vpack.c.b16 %v196, %v195
    %v231 = vpack.c.b16 %v198, %v197
    %v232 = vpack.c.b16 %v200, %v199
    %v233 = vpack.c.b16 %v202, %v201
    %v234 = vpack.c.b16 %v204, %v203
    %v235 = vpack.c.b16 %v206, %v205
    %v236 = vpack.c.b16 %v208, %v207
    %v237 = vpack.c.b16 %v210, %v209
    %v238 = vpack.c.b16 %v212, %v211
    %v239 = vpack.c.b16 %v214, %v213
    %v240 = vpack.c.b16 %v216, %v215
    %v241 = vpack.c.b16 %v218, %v217
    %v242 = vpack.c.b16 %v220, %v219
    %v243 = vpack.c.b16 %v222, %v221
    %v244 = vpack.c.b16 %v224, %v223
    %vm265 = vcmask 523264
    %v267 = vsel %vm265, %v142, 0
    %269 = vmatprep.subr.bf16.mxu0 0
    %270 = vmatpush1.bf16.msra.mxu0 %v225
    %271 = vmatprep.subr.bf16.mxu0 0
    %272 = vmatpush1.bf16.msra.mxu0 %v226
    %273 = vmatprep.subr.bf16.mxu0 0
    %274 = vmatpush1.bf16.msra.mxu0 %v227
    %275 = vmatprep.subr.bf16.mxu0 0
    %276 = vmatpush1.bf16.msra.mxu0 %v228
    %277 = vmatprep.subr.bf16.mxu0 0
    %278 = vmatpush1.bf16.msra.mxu0 %v229
    %279 = vmatprep.subr.bf16.mxu0 0
    %280 = vmatpush1.bf16.msra.mxu0 %v230
    %281 = vmatprep.subr.bf16.mxu0 0
    %282 = vmatpush1.bf16.msra.mxu0 %v231
    %283 = vmatprep.subr.bf16.mxu0 0
    %284 = vmatpush1.bf16.msra.mxu0 %v232
    %285 = vmatprep.subr.bf16.mxu0 0
    %286 = vmatpush1.bf16.msra.mxu0 %v233
    %287 = vmatprep.subr.bf16.mxu0 0
    %288 = vmatpush1.bf16.msra.mxu0 %v234
    %289 = vmatprep.subr.bf16.mxu0 0
    %290 = vmatpush1.bf16.msra.mxu0 %v235
    %291 = vmatprep.subr.bf16.mxu0 0
    %292 = vmatpush1.bf16.msra.mxu0 %v236
    %293 = vmatprep.subr.bf16.mxu0 0
    %294 = vmatpush1.bf16.msra.mxu0 %v237
    %295 = vmatprep.subr.bf16.mxu0 0
    %296 = vmatpush1.bf16.msra.mxu0 %v238
    %297 = vmatprep.subr.bf16.mxu0 0
    %298 = vmatpush1.bf16.msra.mxu0 %v239
    %299 = vmatprep.subr.bf16.mxu0 0
    %300 = vmatpush1.bf16.msra.mxu0 %v240
    %301 = vmatprep.mubr.bf16.mxu0 %v141
    %302 = vmatmul.mubr.bf16.gmra.mrb[0].mxu0 %v140
    %v303 = vpop.f32.mrb[0].mxu0
    %v304 = vadd.f32 %v128, %v303
    %v305 = vpop.f32.mrb[0].mxu0
    %v306 = vpop.f32.mrb[0].mxu0
    %v307 = vadd.f32 %v128, %v306
    %v308 = vpop.f32.mrb[0].mxu0
    %309 = vdwg.mxu0
    %310 = vmatprep.subr.bf16.mxu0 0
    %311 = vmatpush1.bf16.msra.mxu0 %v241
    %312 = vmatprep.subr.bf16.mxu0 0
    %313 = vmatpush1.bf16.msra.mxu0 %v242
    %314 = vmatprep.subr.bf16.mxu0 0
    %315 = vmatpush1.bf16.msra.mxu0 %v243
    %316 = vmatprep.subr.bf16.mxu0 0
    %317 = vmatpush1.bf16.msra.mxu0 %v244
    %318 = vmatprep.subr.bf16.mxu0 0
    %319 = vmatpush1.bf16.msra.mxu0 0
    %320 = vmatprep.subr.bf16.mxu0 0
    %321 = vmatpush1.bf16.msra.mxu0 0
    %322 = vmatprep.subr.bf16.mxu0 0
    %323 = vmatpush1.bf16.msra.mxu0 0
    %324 = vmatprep.subr.bf16.mxu0 0
    %325 = vmatpush1.bf16.msra.mxu0 0
    %326 = vmatprep.subr.bf16.mxu0 0
    %327 = vmatpush1.bf16.msra.mxu0 0
    %328 = vmatprep.subr.bf16.mxu0 0
    %329 = vmatpush1.bf16.msra.mxu0 0
    %330 = vmatprep.subr.bf16.mxu0 0
    %331 = vmatpush1.bf16.msra.mxu0 0
    %332 = vmatprep.subr.bf16.mxu0 0
    %333 = vmatpush1.bf16.msra.mxu0 0
    %334 = vmatprep.subr.bf16.mxu0 0
    %335 = vmatpush1.bf16.msra.mxu0 0
    %336 = vmatprep.subr.bf16.mxu0 0
    %337 = vmatpush1.bf16.msra.mxu0 0
    %338 = vmatprep.subr.bf16.mxu0 0
    %339 = vmatpush1.bf16.msra.mxu0 0
    %340 = vmatprep.subr.bf16.mxu0 0
    %341 = vmatpush1.bf16.msra.mxu0 0
    %342 = vmatprep.mubr.bf16.mxu0 0
    %343 = vmatmul.mubr.bf16.gmra.mrb[0].mxu0 %v267
    %v344 = vpop.f32.mrb[0].mxu0
    %v345 = vadd.f32 %v304, %v344
    %v346 = vpop.f32.mrb[0].mxu0
    %v347 = vpop.f32.mrb[0].mxu0
    %v348 = vadd.f32 %v307, %v347
    %v349 = vpop.f32.mrb[0].mxu0
    %350 = vdwg.mxu0
    loop: start=0, step=1, limit=8
    $region42: #{_forward_embed.1} parent=1 // loop_pre_header
      _
    $region43: #{_forward_embed.1} parent=1 // loop_header
      %s352 = sphi 0, %s356
      %p353 = scmp.ge.s32.totalorder %s352, 8
      %v357 = vphi %v345, %v581
      %v358 = vphi %v348, %v582
    $region44: #{_forward_embed.1} parent=1 // loop_header_branch
      %355 = sbr.rel (%p353) target = $region48
    $region45: #{_forward_embed.1} parent=1 // loop_body
      %v359 = vpack.c.bf16 %v358, %v357
      %s360 = smul.u32 %s352, 16
      %s361 = smul.addr %s360, 4
      %s362 = scalar_lea.vmem [#allocation6], %s361
      %v363 = vld [vmem:[%s362] sm:$0xf]
      %v364 = vld [vmem:[%s362 + $0x4] sm:$0xf]
      %v365 = vld [vmem:[%s362 + $0x8] sm:$0xf]
      %v366 = vld [vmem:[%s362 + $0xc] sm:$0xf]
      %v367 = vld [vmem:[%s362 + $0x10] sm:$0xf]
      %v368 = vld [vmem:[%s362 + $0x14] sm:$0xf]
      %v369 = vld [vmem:[%s362 + $0x18] sm:$0xf]
      %v370 = vld [vmem:[%s362 + $0x1c] sm:$0xf]
      %v371 = vld [vmem:[%s362 + $0x20] sm:$0xf]
      %v372 = vld [vmem:[%s362 + $0x24] sm:$0xf]
      %v373 = vld [vmem:[%s362 + $0x28] sm:$0xf]
      %v374 = vld [vmem:[%s362 + $0x2c] sm:$0xf]
      %v375 = vld [vmem:[%s362 + $0x30] sm:$0xf]
      %v376 = vld [vmem:[%s362 + $0x34] sm:$0xf]
      %v377 = vld [vmem:[%s362 + $0x38] sm:$0xf]
      %v378 = vld [vmem:[%s362 + $0x3c] sm:$0xf]
      %v395 = vunpack.c.l.b16 %v363
      %v396 = vunpack.c.l.b16 %v364
      %v397 = vunpack.c.l.b16 %v365
      %v398 = vunpack.c.l.b16 %v366
      %v399 = vunpack.c.l.b16 %v367
      %v400 = vunpack.c.l.b16 %v368
      %v401 = vunpack.c.l.b16 %v369
      %v402 = vunpack.c.l.b16 %v370
      %v403 = vunpack.c.l.b16 %v371
      %v404 = vunpack.c.l.b16 %v372
      %v405 = vunpack.c.l.b16 %v373
      %v406 = vunpack.c.l.b16 %v374
      %v407 = vunpack.c.l.b16 %v375
      %v408 = vunpack.c.l.b16 %v376
      %v409 = vunpack.c.l.b16 %v377
      %v410 = vunpack.c.l.b16 %v378
      %v411 = vpack.c.b16 %v396, %v395
      %v412 = vpack.c.b16 %v398, %v397
      %v413 = vpack.c.b16 %v400, %v399
      %v414 = vpack.c.b16 %v402, %v401
      %v415 = vpack.c.b16 %v404, %v403
      %v416 = vpack.c.b16 %v406, %v405
      %v417 = vpack.c.b16 %v408, %v407
      %v418 = vpack.c.b16 %v410, %v409
      %427 = vmatprep.subr.bf16.mxu0 0
      %428 = vmatpush1.bf16.msra.mxu0 %v411
      %429 = vmatprep.subr.bf16.mxu0 0
      %430 = vmatpush1.bf16.msra.mxu0 %v412
      %431 = vmatprep.subr.bf16.mxu0 0
      %432 = vmatpush1.bf16.msra.mxu0 %v413
      %433 = vmatprep.subr.bf16.mxu0 0
      %434 = vmatpush1.bf16.msra.mxu0 %v414
      %435 = vmatprep.subr.bf16.mxu0 0
      %436 = vmatpush1.bf16.msra.mxu0 %v415
      %437 = vmatprep.subr.bf16.mxu0 0
      %438 = vmatpush1.bf16.msra.mxu0 %v416
      %439 = vmatprep.subr.bf16.mxu0 0
      %440 = vmatpush1.bf16.msra.mxu0 %v417
      %441 = vmatprep.subr.bf16.mxu0 0
      %442 = vmatpush1.bf16.msra.mxu0 %v418
      %443 = vmatprep.subr.bf16.mxu0 0
      %444 = vmatpush1.bf16.msra.mxu0 0
      %445 = vmatprep.subr.bf16.mxu0 0
      %446 = vmatpush1.bf16.msra.mxu0 0
      %447 = vmatprep.subr.bf16.mxu0 0
      %448 = vmatpush1.bf16.msra.mxu0 0
      %449 = vmatprep.subr.bf16.mxu0 0
      %450 = vmatpush1.bf16.msra.mxu0 0
      %451 = vmatprep.subr.bf16.mxu0 0
      %452 = vmatpush1.bf16.msra.mxu0 0
      %453 = vmatprep.subr.bf16.mxu0 0
      %454 = vmatpush1.bf16.msra.mxu0 0
      %455 = vmatprep.subr.bf16.mxu0 0
      %456 = vmatpush1.bf16.msra.mxu0 0
      %457 = vmatprep.subr.bf16.mxu0 0
      %458 = vmatpush1.bf16.msra.mxu0 0
      %459 = vmatprep.mubr.bf16.mxu0 0
      %460 = vmatmul.mubr.bf16.gmra.mrb[0].mxu0 %v359
      %v461 = vpop.f32.mrb[0].mxu0
      %v462 = vadd.f32 0.0, %v461
      %v463 = vpop.f32.mrb[0].mxu0
      %v464 = vpop.f32.mrb[0].mxu0
      %v465 = vadd.f32 0.0, %v464
      %v466 = vpop.f32.mrb[0].mxu0
      %467 = vdwg.mxu0
      %s468 = scalar_lea.vmem %s5, %s352
      %v469 = vld [vmem:[%s468] sm:$0x1]
      %v471 = vlaneseq
      %v472 = vshrl.u32 %v471, 7
      %v473 = vsub.s32 0, %v472
      %v474 = vrot.slane %v469, %v473
      %v476 = vadd.f32 %v474, %v462
      %v477 = vadd.f32 %v474, %v465
      %478 = vmin.xlane.f32.xlu0 %v476
      %v479 = vpop.xlane.xlu0 %478
      %480 = vmin.xlane.f32.xlu0 %v477
      %v481 = vpop.xlane.xlu0 %480
      %vm482 = vcmp.eq.f32.partialorder %v476, %v479
      %vm483 = vcmp.eq.f32.partialorder %v477, %v481
      %v484 = vsel %vm482, 1, 0
      %v485 = vsel %vm483, 1, 0
      %v486 = vcvt.s32.f32 %v484
      %v487 = vcvt.s32.f32 %v485
      %s488 = smul.u32 %s352, 128
      %s489 = scalar_lea.vmem [#allocation7], %s488
      %v490 = vld [vmem:[%s489] sm:$0xff]
      %v491 = vld [vmem:[%s489 + $0x8] sm:$0xff]
      %v492 = vld [vmem:[%s489 + $0x10] sm:$0xff]
      %v493 = vld [vmem:[%s489 + $0x18] sm:$0xff]
      %v494 = vld [vmem:[%s489 + $0x20] sm:$0xff]
      %v495 = vld [vmem:[%s489 + $0x28] sm:$0xff]
      %v496 = vld [vmem:[%s489 + $0x30] sm:$0xff]
      %v497 = vld [vmem:[%s489 + $0x38] sm:$0xff]
      %v498 = vld [vmem:[%s489 + $0x40] sm:$0xff]
      %v499 = vld [vmem:[%s489 + $0x48] sm:$0xff]
      %v500 = vld [vmem:[%s489 + $0x50] sm:$0xff]
      %v501 = vld [vmem:[%s489 + $0x58] sm:$0xff]
      %v502 = vld [vmem:[%s489 + $0x60] sm:$0xff]
      %v503 = vld [vmem:[%s489 + $0x68] sm:$0xff]
      %v504 = vld [vmem:[%s489 + $0x70] sm:$0xff]
      %v505 = vld [vmem:[%s489 + $0x78] sm:$0xff]
      %506 = vmatprep.subr.mxu0 0.0
      %507 = vmatpush1.msra.mxu0 %v490
      %508 = vmatprep.subr.mxu0 0.0
      %509 = vmatpush1.msra.mxu0 %v491
      %510 = vmatprep.subr.mxu0 0.0
      %511 = vmatpush1.msra.mxu0 %v492
      %512 = vmatprep.subr.mxu0 0.0
      %513 = vmatpush1.msra.mxu0 %v493
      %514 = vmatprep.subr.mxu0 0.0
      %515 = vmatpush1.msra.mxu0 %v494
      %516 = vmatprep.subr.mxu0 0.0
      %517 = vmatpush1.msra.mxu0 %v495
      %518 = vmatprep.subr.mxu0 0.0
      %519 = vmatpush1.msra.mxu0 %v496
      %520 = vmatprep.subr.mxu0 0.0
      %521 = vmatpush1.msra.mxu0 %v497
      %522 = vmatprep.subr.mxu0 0.0
      %523 = vmatpush1.msra.mxu0 %v498
      %524 = vmatprep.subr.mxu0 0.0
      %525 = vmatpush1.msra.mxu0 %v499
      %526 = vmatprep.subr.mxu0 0.0
      %527 = vmatpush1.msra.mxu0 %v500
      %528 = vmatprep.subr.mxu0 0.0
      %529 = vmatpush1.msra.mxu0 %v501
      %530 = vmatprep.subr.mxu0 0.0
      %531 = vmatpush1.msra.mxu0 %v502
      %532 = vmatprep.subr.mxu0 0.0
      %533 = vmatpush1.msra.mxu0 %v503
      %534 = vmatprep.subr.mxu0 0.0
      %535 = vmatpush1.msra.mxu0 %v504
      %536 = vmatprep.subr.mxu0 0.0
      %537 = vmatpush1.msra.mxu0 %v505
      %538 = vmatprep.subr.mxu0 0.0
      %539 = vmatpush1.msra.mxu0 0.0
      %540 = vmatprep.subr.mxu0 0.0
      %541 = vmatpush1.msra.mxu0 0.0
      %542 = vmatprep.subr.mxu0 0.0
      %543 = vmatpush1.msra.mxu0 0.0
      %544 = vmatprep.subr.mxu0 0.0
      %545 = vmatpush1.msra.mxu0 0.0
      %546 = vmatprep.subr.mxu0 0.0
      %547 = vmatpush1.msra.mxu0 0.0
      %548 = vmatprep.subr.mxu0 0.0
      %549 = vmatpush1.msra.mxu0 0.0
      %550 = vmatprep.subr.mxu0 0.0
      %551 = vmatpush1.msra.mxu0 0.0
      %552 = vmatprep.subr.mxu0 0.0
      %553 = vmatpush1.msra.mxu0 0.0
      %554 = vmatprep.subr.mxu0 0.0
      %555 = vmatpush1.msra.mxu0 0.0
      %556 = vmatprep.subr.mxu0 0.0
      %557 = vmatpush1.msra.mxu0 0.0
      %558 = vmatprep.subr.mxu0 0.0
      %559 = vmatpush1.msra.mxu0 0.0
      %560 = vmatprep.subr.mxu0 0.0
      %561 = vmatpush1.msra.mxu0 0.0
      %562 = vmatprep.subr.mxu0 0.0
      %563 = vmatpush1.msra.mxu0 0.0
      %564 = vmatprep.subr.mxu0 0.0
      %565 = vmatpush1.msra.mxu0 0.0
      %566 = vmatprep.subr.mxu0 0.0
      %567 = vmatpush1.msra.mxu0 0.0
      %568 = vmatprep.subr.mxu0 0.0
      %569 = vmatpush1.msra.mxu0 0.0
      %570 = vmatprep.mubr.f32.mxu0 0.0
      %571 = vmatmul.mubr.f32.gmra.mrb[0].mxu0 %v486
      %v572 = vpop.f32.mrb[0].mxu0
      %v573 = vadd.f32 0.0, %v572
      %v574 = vpop.f32.mrb[0].mxu0
      %575 = vmatprep.mubr.f32.mxu0 0.0
      %576 = vmatmul.mubr.f32.gmra.mrb[0].mxu0 %v487
      %v577 = vpop.f32.mrb[0].mxu0
      %v578 = vadd.f32 0.0, %v577
      %v579 = vpop.f32.mrb[0].mxu0
      %580 = vdwg.mxu0
      %v581 = vsub.f32 %v357, %v573
      %v582 = vsub.f32 %v358, %v578
    $region46: #{_forward_embed.1} parent=1 // loop_footer
      %s356 = sadd.s32 1, %s352
    $region47: #{_forward_embed.1} parent=1 // loop_footer_branch
      %351 = sbr.rel target = $region43
    $region48: #{_forward_embed.1} parent=1 // loop_exit
      _
    %v583 = vsub.f32 %v345, %v357
    %v584 = vsub.f32 %v348, %v358
    %585 = vst [vmem:[%s6] sm:$0xff] %v583
    %586 = vst [vmem:[%s6 + $0x8] sm:$0xff] %v584
    // Predicated region
    $region49: #{_forward_embed.1} parent=1 // pred_check
      _
    $region50: #{_forward_embed.1} parent=1 // pred_check_branch
      %588 = sbr.rel (0) target = $region52
    $region51: #{_forward_embed.1} parent=1 // pred_region
      _
    $region52: #{_forward_embed.1} parent=1 // pred_fallthru
      _
    // Predicated region
    $region53: #{_forward_embed.1} parent=1 // pred_check
      _
    $region54: #{_forward_embed.1} parent=1 // pred_check_branch
      %590 = sbr.rel (0) target = $region56
    $region55: #{_forward_embed.1} parent=1 // pred_region
      _
    $region56: #{_forward_embed.1} parent=1 // pred_fallthru
      _
    %591 = vsyncpa [#allocation3], 1
    %592 = vsyncpa [#allocation5], 1
    %593 = vsyncpa [#allocation8], 1

</llo_original>
